<compile_context>
chip_gen: v6e
topology: v6e:2x2x1
jax: 0.10.0
libtpu: 0.0.40
codegen_flags: <defaults>
</compile_context>

<pallas_src>
import jax
import jax.numpy as jnp
from jax.experimental import pallas as pl
from jax.experimental.pallas import tpu as pltpu


_LANE = 128
_VMEM_CAP_BYTES = 48 * 1024 * 1024     # leaves headroom on v7x (64 MiB/TC)
_TILE_BUDGET_BYTES = 6 * 1024 * 1024   # padded x-tile target (fits 4x under cap)


def _round_up(x, m):
    return (x + m - 1) // m * m


def _choose_hw_tile(hw, c_pad, itemsize, budget=_TILE_BUDGET_BYTES):
    """Largest HW (lane-axis) tile: multiple of 128, padded footprint <= budget.
    If HW itself fits, use the full extent (block == full dim is always legal)."""
    max_lanes = max(budget // max(c_pad * itemsize, 1), _LANE)
    max_lanes = (max_lanes // _LANE) * _LANE
    if hw <= max_lanes:
        return hw
    return max_lanes


# ---------------------------------------------------------------------------
# Pass 1: global-average-pool accumulation over HW tiles (NCHW-native).
# ---------------------------------------------------------------------------
def _make_pool_kernel(hw, t_hw):
    has_tail = (hw % t_hw) != 0

    def pool_kernel(x_ref, sum_ref):
        # x_ref:   (1, C, t_hw) input tile, HW on the lane axis
        # sum_ref: (1, C, 1)    f32 running channel sums (resident across HW axis)
        h = pl.program_id(1)

        @pl.when(h == 0)
        def _():
            sum_ref[...] = jnp.zeros_like(sum_ref)

        x = x_ref[0].astype(jnp.float32)                       # (C, t_hw)
        if has_tail:
            lane = jax.lax.broadcasted_iota(jnp.int32, x.shape, 1)
            x = jnp.where(lane < (hw - h * t_hw), x, 0.0)      # mask OOB tail lanes
        sum_ref[0] += jnp.sum(x, axis=1, keepdims=True)        # lane (XLU) reduce

    return pool_kernel


# ---------------------------------------------------------------------------
# Pass 2 (fused): excitation (Linear -> ReLU -> Linear -> Sigmoid) + rescale.
# Gate is recomputed per tile (tiny: ~4*C*R flops, hidden under tile DMA) so
# both grid axes stay "parallel" for megacore sharding of the mem-bound pass.
# ---------------------------------------------------------------------------
def _scale_kernel(x_ref, sum_ref, w1_ref, w2_ref, o_ref):
    # x_ref:   (1, C, t_hw)   input tile
    # sum_ref: (1, C, 1)      f32 channel sums (1/HW already folded into w1)
    # w1_ref:  (R, C) f32     fc1.weight / HW
    # w2_ref:  (C, R) f32     fc2.weight
    # o_ref:   (1, C, t_hw)   output tile
    p = sum_ref[0]                                                      # (C, 1)
    h = jnp.dot(w1_ref[...], p, preferred_element_type=jnp.float32)     # (R, 1)
    h = jnp.maximum(h, 0.0)
    g = jnp.dot(w2_ref[...], h, preferred_element_type=jnp.float32)     # (C, 1)
    gate = jax.nn.sigmoid(g).astype(x_ref.dtype)                        # (C, 1)
    o_ref[0] = x_ref[0] * gate                                          # lane broadcast


@jax.jit
def mix2_se_block(x_nchw, w_fc1, w_fc2):
    """SE block forward. x_nchw: (B, C, H, W); w_fc1: (R, C); w_fc2: (C, R)."""
    B, C, H, W = x_nchw.shape
    HW = H * W
    R = w_fc1.shape[0]
    itemsize = x_nchw.dtype.itemsize

    x = x_nchw.reshape(B, C, HW)                 # free reshape, NCHW-native kernels

    # Fold the 1/HW mean normalization into fc1's weight once, in f32.
    w1 = w_fc1.astype(jnp.float32) / HW          # (R, C)
    w2 = w_fc2.astype(jnp.float32)               # (C, R)

    # Padded-footprint VMEM math: sublane multiple is 8 (f32) / 16 (bf16) / 32 (int8).
    sub = max(32 // itemsize, 8)
    c_pad = _round_up(C, sub)
    t_hw = _choose_hw_tile(HW, c_pad, itemsize)
    n_hw = pl.cdiv(HW, t_hw)
    tile_bytes = c_pad * _round_up(t_hw, _LANE) * itemsize
    small_bytes = (c_pad * _LANE * 4                               # pooled block
                   + _round_up(R, 8) * _round_up(C, _LANE) * 4     # w1
                   + _round_up(C, 8) * _round_up(R, _LANE) * 4)    # w2
    vmem_bytes = int(min(_VMEM_CAP_BYTES,
                         max(16 * 1024 * 1024,
                             4 * tile_bytes + 4 * small_bytes + (2 << 20))))

    # --- Pass 1: pooled channel sums (f32 accumulation). --------------------
    pooled = pl.pallas_call(
        _make_pool_kernel(HW, t_hw),
        out_shape=jax.ShapeDtypeStruct((B, C, 1), jnp.float32),
        grid_spec=pltpu.PrefetchScalarGridSpec(
            num_scalar_prefetch=0,
            grid=(B, n_hw),
            in_specs=[pl.BlockSpec((1, C, t_hw), lambda b, h: (b, 0, h))],
            out_specs=pl.BlockSpec((1, C, 1), lambda b, h: (b, 0, 0)),
        ),
        compiler_params=pltpu.CompilerParams(
            dimension_semantics=("parallel", "arbitrary"),
            vmem_limit_bytes=vmem_bytes),
        cost_estimate=pl.CostEstimate(
            flops=B * HW * C,
            transcendentals=0,
            bytes_accessed=B * HW * C * itemsize + B * C * 4),
    )(x)

    # --- Pass 2: fused excitation + channel-wise rescale (mem-bound). -------
    out = pl.pallas_call(
        _scale_kernel,
        out_shape=jax.ShapeDtypeStruct((B, C, HW), x_nchw.dtype),
        grid_spec=pltpu.PrefetchScalarGridSpec(
            num_scalar_prefetch=0,
            grid=(B, n_hw),
            in_specs=[
                pl.BlockSpec((1, C, t_hw), lambda b, h: (b, 0, h)),
                pl.BlockSpec((1, C, 1), lambda b, h: (b, 0, 0)),
                pl.BlockSpec((R, C), lambda b, h: (0, 0)),
                pl.BlockSpec((C, R), lambda b, h: (0, 0)),
            ],
            out_specs=pl.BlockSpec((1, C, t_hw), lambda b, h: (b, 0, h)),
        ),
        compiler_params=pltpu.CompilerParams(
            dimension_semantics=("parallel", "parallel"),
            vmem_limit_bytes=vmem_bytes),
        cost_estimate=pl.CostEstimate(
            flops=B * HW * C + B * n_hw * 4 * C * R,
            transcendentals=B * n_hw * C,
            bytes_accessed=2 * B * HW * C * itemsize + B * C * 4 + 2 * C * R * 4),
    )(x, pooled, w1, w2)

    return out.reshape(B, C, H, W)


def _reference(x_nchw, w_fc1, w_fc2):
    # Pure-JAX reference matching the PyTorch forward.
    y = jnp.mean(x_nchw, axis=(2, 3))                       # (B, C)
    y = jnp.maximum(y @ w_fc1.T, 0.0)                       # (B, R)
    y = jax.nn.sigmoid(y @ w_fc2.T)                         # (B, C)
    return x_nchw * y[:, :, None, None]


if __name__ == "__main__":
    B, C, H, W = 2, 4, 16, 16
    reduction = 16
    R = max(C // reduction, 8)  # = 8

    key = jax.random.PRNGKey(0)
    kx, k1, k2 = jax.random.split(key, 3)
    x = jax.random.normal(kx, (B, C, H, W), dtype=jnp.float32)
    # Deterministic synthetic parameters (Linear weights, no bias).
    w_fc1 = jax.random.normal(k1, (R, C), dtype=jnp.float32) * 0.1
    w_fc2 = jax.random.normal(k2, (C, R), dtype=jnp.float32) * 0.1

    out = jax.block_until_ready(mix2_se_block(x, w_fc1, w_fc2))

    ref = _reference(x, w_fc1, w_fc2)
    assert out.shape == (B, C, H, W)
    assert jnp.allclose(out, ref, atol=1e-5, rtol=1e-5), "mismatch vs reference"

    print("KERNEL_OK")
</pallas_src>

<mosaic_0001>
module attributes {stable_mosaic.version = 11 : i64} {
  func.func @_scale_kernel(%arg0: i32, %arg1: i32, %arg2: memref<1x4x256xf32, #tpu.memory_space<vmem>>, %arg3: memref<1x4x1xf32, #tpu.memory_space<vmem>>, %arg4: memref<8x4xf32, #tpu.memory_space<vmem>>, %arg5: memref<4x8xf32, #tpu.memory_space<vmem>>, %arg6: memref<1x4x256xf32, #tpu.memory_space<vmem>>) attributes {dimension_semantics = [#tpu.dimension_semantics<parallel>, #tpu.dimension_semantics<parallel>], iteration_bounds = array<i64: 2, 1>, scalar_prefetch = 0 : i64, scratch_operands = 0 : i64, tpu.core_type = #tpu.core_type<tc>, window_params = [{transform_indices = @transform_0, window_bounds = array<i64: 1, 4, 256>}, {transform_indices = @transform_1, window_bounds = array<i64: 1, 4, 1>}, {pipeline_mode = #tpu.pipeline_mode<synchronous>, transform_indices = @transform_2, window_bounds = array<i64: 8, 4>}, {pipeline_mode = #tpu.pipeline_mode<synchronous>, transform_indices = @transform_3, window_bounds = array<i64: 4, 8>}, {transform_indices = @transform_4, window_bounds = array<i64: 1, 4, 256>}]} {
    %c0 = arith.constant 0 : index
    %c0_0 = arith.constant 0 : index
    %c0_1 = arith.constant 0 : index
    %0 = vector.load %arg3[%c0, %c0_0, %c0_1] : memref<1x4x1xf32, #tpu.memory_space<vmem>>, vector<1x4x1xf32>
    %1 = vector.shape_cast %0 : vector<1x4x1xf32> to vector<4x1xf32>
    %c0_2 = arith.constant 0 : index
    %c0_3 = arith.constant 0 : index
    %2 = vector.load %arg4[%c0_2, %c0_3] : memref<8x4xf32, #tpu.memory_space<vmem>>, vector<8x4xf32>
    %cst = arith.constant dense<0.000000e+00> : vector<8x1xf32>
    %3 = tpu.matmul %2, %1, %cst {dimension_numbers = #tpu.dot_dimension_numbers<[1], [0], [0], [1], [0, 0, 1, 1], [], []>} : vector<8x4xf32>, vector<4x1xf32>, vector<8x1xf32> -> vector<8x1xf32>
    %cst_4 = arith.constant 0.000000e+00 : f32
    %4 = vector.broadcast %cst_4 : f32 to vector<8x1xf32>
    %5 = arith.maximumf %3, %4 : vector<8x1xf32>
    %c0_5 = arith.constant 0 : index
    %c0_6 = arith.constant 0 : index
    %6 = vector.load %arg5[%c0_5, %c0_6] : memref<4x8xf32, #tpu.memory_space<vmem>>, vector<4x8xf32>
    %cst_7 = arith.constant dense<0.000000e+00> : vector<4x1xf32>
    %7 = tpu.matmul %6, %5, %cst_7 {dimension_numbers = #tpu.dot_dimension_numbers<[1], [0], [0], [1], [0, 0, 1, 1], [], []>} : vector<4x8xf32>, vector<8x1xf32>, vector<4x1xf32> -> vector<4x1xf32>
    %8 = arith.negf %7 : vector<4x1xf32>
    %9 = math.exp %8 : vector<4x1xf32>
    %cst_8 = arith.constant 1.000000e+00 : f32
    %10 = vector.broadcast %cst_8 : f32 to vector<4x1xf32>
    %11 = arith.addf %10, %9 : vector<4x1xf32>
    %12 = arith.divf %10, %11 : vector<4x1xf32>
    %c0_9 = arith.constant 0 : index
    %c0_10 = arith.constant 0 : index
    %c0_11 = arith.constant 0 : index
    %13 = vector.load %arg2[%c0_9, %c0_10, %c0_11] : memref<1x4x256xf32, #tpu.memory_space<vmem>>, vector<1x4x256xf32>
    %14 = vector.shape_cast %13 : vector<1x4x256xf32> to vector<4x256xf32>
    %15 = vector.broadcast %12 : vector<4x1xf32> to vector<4x256xf32>
    %16 = arith.mulf %14, %15 : vector<4x256xf32>
    %c0_12 = arith.constant 0 : index
    %c0_13 = arith.constant 0 : index
    %c0_14 = arith.constant 0 : index
    %17 = vector.load %arg6[%c0_12, %c0_13, %c0_14] : memref<1x4x256xf32, #tpu.memory_space<vmem>>, vector<1x4x256xf32>
    %18 = vector.shape_cast %17 : vector<1x4x256xf32> to vector<4x256xf32>
    %19 = vector.shape_cast %16 : vector<4x256xf32> to vector<1x4x256xf32>
    tpu.vector_store %arg6[%c0_12, %c0_13, %c0_14], %19 {strides = array<i32>} : memref<1x4x256xf32, #tpu.memory_space<vmem>>, vector<1x4x256xf32>,
    return
  }
  func.func @transform_0(%arg0: i32, %arg1: i32) -> (i32, i32, i32) {
    %c0_i32 = arith.constant 0 : i32
    %c0_i32_0 = arith.constant 0 : i32
    return %arg0, %c0_i32, %arg1 : i32, i32, i32
  }
  func.func @transform_1(%arg0: i32, %arg1: i32) -> (i32, i32, i32) {
    %c0_i32 = arith.constant 0 : i32
    %c0_i32_0 = arith.constant 0 : i32
    %c0_i32_1 = arith.constant 0 : i32
    return %arg0, %c0_i32, %c0_i32_0 : i32, i32, i32
  }
  func.func @transform_2(%arg0: i32, %arg1: i32) -> (i32, i32) {
    %c0_i32 = arith.constant 0 : i32
    %c0_i32_0 = arith.constant 0 : i32
    %c0_i32_1 = arith.constant 0 : i32
    return %c0_i32, %c0_i32_0 : i32, i32
  }
  func.func @transform_3(%arg0: i32, %arg1: i32) -> (i32, i32) {
    %c0_i32 = arith.constant 0 : i32
    %c0_i32_0 = arith.constant 0 : i32
    %c0_i32_1 = arith.constant 0 : i32
    return %c0_i32, %c0_i32_0 : i32, i32
  }
  func.func @transform_4(%arg0: i32, %arg1: i32) -> (i32, i32, i32) {
    %c0_i32 = arith.constant 0 : i32
    %c0_i32_0 = arith.constant 0 : i32
    return %arg0, %c0_i32, %arg1 : i32, i32, i32
  }
}

module attributes {stable_mosaic.version = 11 : i64} {
  func.func @pool_kernel(%arg0: i32, %arg1: i32, %arg2: memref<1x4x256xf32, #tpu.memory_space<vmem>>, %arg3: memref<1x4x1xf32, #tpu.memory_space<vmem>>) attributes {dimension_semantics = [#tpu.dimension_semantics<parallel>, #tpu.dimension_semantics<arbitrary>], iteration_bounds = array<i64: 2, 1>, scalar_prefetch = 0 : i64, scratch_operands = 0 : i64, tpu.core_type = #tpu.core_type<tc>, window_params = [{transform_indices = @transform_0, window_bounds = array<i64: 1, 4, 256>}, {transform_indices = @transform_1, window_bounds = array<i64: 1, 4, 1>}]} {
    %c0_i32 = arith.constant 0 : i32
    %0 = arith.cmpi eq, %arg1, %c0_i32 : i32
    %1 = arith.extui %0 : i1 to i32
    %c0_i32_0 = arith.constant 0 : i32
    %2 = arith.cmpi ne, %1, %c0_i32_0 : i32
    scf.if %2 {
      %cst_9 = arith.constant 0.000000e+00 : f32
      %13 = vector.broadcast %cst_9 : f32 to vector<1x4x1xf32>
      %c0_10 = arith.constant 0 : index
      %c0_11 = arith.constant 0 : index
      %c0_12 = arith.constant 0 : index
      %14 = vector.load %arg3[%c0_10, %c0_11, %c0_12] : memref<1x4x1xf32, #tpu.memory_space<vmem>>, vector<1x4x1xf32>
      tpu.vector_store %arg3[%c0_10, %c0_11, %c0_12], %13 {strides = array<i32>} : memref<1x4x1xf32, #tpu.memory_space<vmem>>, vector<1x4x1xf32>,
    } else {
    }
    %c0 = arith.constant 0 : index
    %c0_1 = arith.constant 0 : index
    %c0_2 = arith.constant 0 : index
    %3 = vector.load %arg2[%c0, %c0_1, %c0_2] : memref<1x4x256xf32, #tpu.memory_space<vmem>>, vector<1x4x256xf32>
    %4 = vector.shape_cast %3 : vector<1x4x256xf32> to vector<4x256xf32>
    %c0_3 = arith.constant 0 : index
    %c0_4 = arith.constant 0 : index
    %c0_5 = arith.constant 0 : index
    %5 = vector.load %arg3[%c0_3, %c0_4, %c0_5] : memref<1x4x1xf32, #tpu.memory_space<vmem>>, vector<1x4x1xf32>
    %6 = vector.shape_cast %5 : vector<1x4x1xf32> to vector<4x1xf32>
    %cst = arith.constant dense<0.000000e+00> : vector<4xf32>
    %7 = vector.multi_reduction <add>, %4, %cst [1] : vector<4x256xf32> to vector<4xf32>
    %8 = vector.shape_cast %7 : vector<4xf32> to vector<4x1xf32>
    %9 = arith.addf %6, %8 : vector<4x1xf32>
    %c0_6 = arith.constant 0 : index
    %c0_7 = arith.constant 0 : index
    %c0_8 = arith.constant 0 : index
    %10 = vector.load %arg3[%c0_6, %c0_7, %c0_8] : memref<1x4x1xf32, #tpu.memory_space<vmem>>, vector<1x4x1xf32>
    %11 = vector.shape_cast %10 : vector<1x4x1xf32> to vector<4x1xf32>
    %12 = vector.shape_cast %9 : vector<4x1xf32> to vector<1x4x1xf32>
    tpu.vector_store %arg3[%c0_6, %c0_7, %c0_8], %12 {strides = array<i32>} : memref<1x4x1xf32, #tpu.memory_space<vmem>>, vector<1x4x1xf32>,
    return
  }
  func.func @transform_0(%arg0: i32, %arg1: i32) -> (i32, i32, i32) {
    %c0_i32 = arith.constant 0 : i32
    %c0_i32_0 = arith.constant 0 : i32
    return %arg0, %c0_i32, %arg1 : i32, i32, i32
  }
  func.func @transform_1(%arg0: i32, %arg1: i32) -> (i32, i32, i32) {
    %c0_i32 = arith.constant 0 : i32
    %c0_i32_0 = arith.constant 0 : i32
    %c0_i32_1 = arith.constant 0 : i32
    return %arg0, %c0_i32, %c0_i32_0 : i32, i32, i32
  }
}

</mosaic_0001>

<llo_original>
// kernel: mix2_se_block.2
$region0: #{mix2_se_block.2}
  #allocation0 [shape = 'u32[]', space=smem, size = 0x4, offset = 0x4, fixed_abs, tag = 'smem constant byte address 0x4 - core index']
  #allocation1 [shape = 'u32[144,128]{1,0:T(1,128)}', space=vmem, size = 0x12000, scoped, tag = 'internal scratch']
  %s0 = inlined_call_operand.vmem [shape: f32[2,4,256], index: 0, kind: input, shape index: {}]
  %s1 = inlined_call_operand.vmem [shape: f32[2,4,1], index: 1, kind: output, shape index: {}]
  %s2 = sld [smem:[#allocation0]]
  $region41: #{mix2_se_block.2} parent=0
    _
  %s4 = ssub.s32 1, %s2
  %s5 = scalar_select 0, %s4, %s2
  loop: start=0, step=1, limit=4
  $region2: #{mix2_se_block.2} parent=0 // loop_pre_header
    _
  $region3: #{mix2_se_block.2} parent=0 // loop_header
    %s7 = sphi 0, %s11
    %p8 = scmp.ge.s32.totalorder %s7, 4
    %s14 = sphi 0, %s26
    %s15 = sphi 0, %s22
    %s16 = sphi 0, %s14
    %s17 = sphi 0, %s15
    %s18 = sphi 0, %s16
    %s19 = sphi 0, %s17
    %s31 = sphi 0, %s33
    %s34 = sphi 0, %s31
    %s35 = sphi 0, %s34
    %s51 = sphi 0, %s35
    %s57 = sphi 0, %s59
    %s60 = sphi 0, %s57
    %s61 = sphi 0, %s60
    %s77 = sphi 0, %s61
  $region4: #{mix2_se_block.2} parent=0 // loop_header_branch
    %10 = sbr.rel (%p8) target = $region8
  $region5: #{mix2_se_block.2} parent=0 // loop_body
    %s12 = ssub.s32 %s7, 1
    %s13 = ssub.s32 %s7, 2
    %s20 = sadd.s32 1, %s15
    %p21 = scmp.ge.s32.totalorder %s20, 1
    %s22 = scalar_select %p21, 0, %s20
    %s23 = sadd.s32 1, %s14
    %s24 = scalar_select %p21, %s23, %s14
    %p25 = scmp.ge.s32.totalorder %s24, 2
    %s26 = scalar_select %p25, 0, %s24
    %s27 = ssub.s32 %s14, %s26
    %s28 = ssub.s32 %s15, %s22
    %s29 = sor.u32 %s27, %s28
    %p30 = scmp.eq.s32.totalorder %s29, 0
    %s32 = sadd.s32 %s31, 1
    %s33 = scalar_select %p30, %s31, %s32
    %p36 = pneg %p30
    %p37 = scmp.eq.s32.totalorder %s7, 1
    %p38 = por %p36, %p37
    %p39 = scmp.ne.s32.totalorder %s31, %s34
    %p40 = scmp.eq.s32.totalorder %s7, 0
    %p41 = por %p39, %p40
    %p42 = scmp.ne.s32.totalorder %s31, %s34
    %p43 = scmp.eq.s32.totalorder %s12, 1
    %p44 = por %p42, %p43
    %p45 = scmp.ne.s32.totalorder %s34, %s35
    %p46 = scmp.eq.s32.totalorder %s12, 0
    %p47 = por %p45, %p46
    %p48 = scmp.ne.s32.totalorder %s34, %s35
    %p49 = scmp.eq.s32.totalorder %s13, 1
    %p50 = por %p48, %p49
    %p52 = scmp.ne.s32.totalorder %s35, %s51
    %p53 = scmp.eq.s32.totalorder %s13, 0
    %p54 = por %p52, %p53
    %s55 = ssub.s32 %s14, %s26
    %p56 = scmp.eq.s32.totalorder %s55, 0
    %s58 = sadd.s32 %s57, 1
    %s59 = scalar_select %p56, %s57, %s58
    %p62 = pneg %p56
    %p63 = scmp.eq.s32.totalorder %s7, 1
    %p64 = por %p62, %p63
    %p65 = scmp.ne.s32.totalorder %s57, %s60
    %p66 = scmp.eq.s32.totalorder %s7, 0
    %p67 = por %p65, %p66
    %p68 = scmp.ne.s32.totalorder %s57, %s60
    %p69 = scmp.eq.s32.totalorder %s12, 1
    %p70 = por %p68, %p69
    %p71 = scmp.ne.s32.totalorder %s60, %s61
    %p72 = scmp.eq.s32.totalorder %s12, 0
    %p73 = por %p71, %p72
    %p74 = scmp.ne.s32.totalorder %s60, %s61
    %p75 = scmp.eq.s32.totalorder %s13, 1
    %p76 = por %p74, %p75
    %p78 = scmp.ne.s32.totalorder %s61, %s77
    %p79 = scmp.eq.s32.totalorder %s13, 0
    %p80 = por %p78, %p79
    %p81 = scmp.le.s32.totalorder 1, %s7
    %p82 = scmp.lt.s32.totalorder %s7, 3
    %p83 = pnand %p81, %p82
    %p84 = pneg %p83
    // Predicated region
    $region9: #{mix2_se_block.2} parent=5 // pred_check
      _
    $region10: #{mix2_se_block.2} parent=5 // pred_check_branch
      %86 = sbr.rel (%p83) target = $region12
    $region11: #{mix2_se_block.2} parent=5 // pred_region
      %s87 = ssub.s32 %s7, 1
    $region12: #{mix2_se_block.2} parent=5 // pred_fallthru
      _
    %p88 = scmp.lt.s32.totalorder %s7, 2
    // Predicated region
    $region13: #{mix2_se_block.2} parent=5 // pred_check
      %p89 = pneg %p88
    $region14: #{mix2_se_block.2} parent=5 // pred_check_branch
      %91 = sbr.rel (%p89) target = $region16
    $region15: #{mix2_se_block.2} parent=5 // pred_region
      // Predicated region
      $region17: #{mix2_se_block.2} parent=15 // pred_check
        %p92 = pneg %p41
      $region18: #{mix2_se_block.2} parent=15 // pred_check_branch
        %94 = sbr.rel (%p92) target = $region20
      $region19: #{mix2_se_block.2} parent=15 // pred_region
        %s95 = smul.u32 2, %s15
        %p96 = scmp.lt.s32.totalorder %s14, 1
        %s97 = scalar_select %p96, %s14, 1
        %p98 = scmp.lt.s32.totalorder %s95, 1
        %s99 = scalar_select %p98, %s95, 1
        %s100 = smul.addr %s97, 2
        %s101 = sadd.s32 %s99, %s100
        %s102 = smul.addr %s101, 4
        %s103 = scalar_lea.vmem %s0, %s102
        %s104 = smul.u32 2, %s15
      $region20: #{mix2_se_block.2} parent=15 // pred_fallthru
        _
    $region16: #{mix2_se_block.2} parent=5 // pred_fallthru
      _
    %p105 = scmp.le.s32.totalorder 1, %s7
    %p106 = scmp.lt.s32.totalorder %s7, 3
    %p107 = pnand %p105, %p106
    %p108 = pneg %p107
    // Predicated region
    $region21: #{mix2_se_block.2} parent=5 // pred_check
      _
    $region22: #{mix2_se_block.2} parent=5 // pred_check_branch
      %110 = sbr.rel (%p107) target = $region24
    $region23: #{mix2_se_block.2} parent=5 // pred_region
      %s111 = ssub.s32 %s7, 1
      %s112 = smul.u32 2, %s17
      %p113 = scmp.lt.s32.totalorder %s16, 1
      %s114 = scalar_select %p113, %s16, 1
      %p115 = scmp.lt.s32.totalorder %s112, 1
      %s116 = scalar_select %p115, %s112, 1
      %s117 = smul.addr %s114, 2
      %s118 = sadd.s32 %s116, %s117
      %s119 = smul.addr %s118, 4
      %s120 = scalar_lea.vmem %s0, %s119
      %p121 = pneg %p47
      %p122 = pneg %p44
      %p123 = pneg %p73
      %p124 = pneg %p70
      %p125 = scmp.lt.s32.totalorder %s16, 1
      %s126 = scalar_select %p125, %s16, 1
      %s127 = smul.addr %s126, 4
      %s128 = scalar_lea.vmem %s1, %s127
      %s129 = smul.u32 2, %s17
      %p130 = scmp.lt.s32.totalorder %s16, 1
      %s131 = scalar_select %p130, %s16, 1
      %p132 = scmp.lt.s32.totalorder %s129, 1
      %s133 = scalar_select %p132, %s129, 1
      %s134 = smul.addr %s131, 2
      %s135 = sadd.s32 %s133, %s134
      %s136 = smul.addr %s135, 4
      %s137 = scalar_lea.vmem %s0, %s136
      %s138 = smul.u32 2, %s17
      %p139 = scmp.lt.s32.totalorder %s16, 1
      %s140 = scalar_select %p139, %s16, 1
      %s141 = smul.addr %s140, 4
      %s142 = scalar_lea.vmem %s1, %s141
      %p143 = scmp.eq.s32.totalorder %s17, 0
      // Predicated region
      $region25: #{mix2_se_block.2} parent=23 // pred_check
        %p144 = pneg %p143
      $region26: #{mix2_se_block.2} parent=23 // pred_check_branch
        %146 = sbr.rel (%p144) target = $region28
      $region27: #{mix2_se_block.2} parent=23 // pred_region
        %vm147 = vcmask 3072
        %148 = vst.msk [vmem:[%s142] sm:$0xf] %vm147, 0.0
      $region28: #{mix2_se_block.2} parent=23 // pred_fallthru
        _
      %v149 = vld [vmem:[%s137] sm:$0xff]
      %v150 = vld [vmem:[%s142] sm:$0xf]
      %v152 = vcombine.high %v149, %v149
      %vm154 = vcmask 1043456
      %v155 = vsel %vm154, %v149, 0.0
      %v156 = vsel %vm154, %v152, 0.0
      %v157 = vadd.f32 %v155, %v156
      %158 = vadd.xlane.f32.xlu0 %v157
      %v159 = vpop.xlane.xlu0 %158
      %v160 = vadd.f32 %v150, %v159
      %vm161 = vcmask 3072
      %162 = vst.msk [vmem:[%s142] sm:$0xf] %vm161, %v160
      %p163 = scmp.lt.s32.totalorder %s16, 1
      %s164 = scalar_select %p163, %s16, 1
      %s165 = smul.addr %s164, 4
      %s166 = scalar_lea.vmem %s1, %s165
      // Predicated region
      $region29: #{mix2_se_block.2} parent=23 // pred_check
        %p167 = pneg %p70
      $region30: #{mix2_se_block.2} parent=23 // pred_check_branch
        %169 = sbr.rel (%p167) target = $region32
      $region31: #{mix2_se_block.2} parent=23 // pred_region
        _
      $region32: #{mix2_se_block.2} parent=23 // pred_fallthru
        _
    $region24: #{mix2_se_block.2} parent=5 // pred_fallthru
      _
    %p170 = scmp.le.s32.totalorder 2, %s7
    // Predicated region
    $region33: #{mix2_se_block.2} parent=5 // pred_check
      %p171 = pneg %p170
    $region34: #{mix2_se_block.2} parent=5 // pred_check_branch
      %173 = sbr.rel (%p171) target = $region36
    $region35: #{mix2_se_block.2} parent=5 // pred_region
      %s174 = ssub.s32 %s7, 2
      // Predicated region
      $region37: #{mix2_se_block.2} parent=35 // pred_check
        %p175 = pneg %p76
      $region38: #{mix2_se_block.2} parent=35 // pred_check_branch
        %177 = sbr.rel (%p175) target = $region40
      $region39: #{mix2_se_block.2} parent=35 // pred_region
        %p178 = scmp.lt.s32.totalorder %s18, 1
        %s179 = scalar_select %p178, %s18, 1
        %s180 = smul.addr %s179, 4
        %s181 = scalar_lea.vmem %s1, %s180
      $region40: #{mix2_se_block.2} parent=35 // pred_fallthru
        _
    $region36: #{mix2_se_block.2} parent=5 // pred_fallthru
      _
  $region6: #{mix2_se_block.2} parent=0 // loop_footer
    %s11 = sadd.s32 1, %s7
  $region7: #{mix2_se_block.2} parent=0 // loop_footer_branch
    %6 = sbr.rel target = $region3
  $region8: #{mix2_se_block.2} parent=0 // loop_exit
    _

// kernel: mix2_se_block.3
$region0: #{mix2_se_block.3}
  #allocation0 [shape = 'u32[]', space=smem, size = 0x4, offset = 0x4, fixed_abs, tag = 'smem constant byte address 0x4 - core index']
  #allocation1 [shape = 'u32[144,128]{1,0:T(1,128)}', space=vmem, size = 0x12000, scoped, tag = 'internal scratch']
  %s0 = inlined_call_operand.vmem [shape: f32[2,4,256], index: 0, kind: input, shape index: {}]
  %s1 = inlined_call_operand.vmem [shape: f32[2,4,1], index: 1, kind: input, shape index: {}]
  %s2 = inlined_call_operand.vmem [shape: f32[8,4], index: 2, kind: input, shape index: {}]
  %s3 = inlined_call_operand.vmem [shape: f32[4,8], index: 3, kind: input, shape index: {}]
  %s4 = inlined_call_operand.vmem [shape: f32[2,4,256], index: 4, kind: output, shape index: {}]
  %s5 = sld [smem:[#allocation0]]
  $region49: #{mix2_se_block.3} parent=0
    _
  %s7 = ssub.s32 1, %s5
  %s8 = scalar_select 0, %s7, %s5
  loop: start=0, step=1, limit=4
  $region2: #{mix2_se_block.3} parent=0 // loop_pre_header
    _
  $region3: #{mix2_se_block.3} parent=0 // loop_header
    %s10 = sphi 0, %s14
    %p11 = scmp.ge.s32.totalorder %s10, 4
    %s17 = sphi 0, %s29
    %s18 = sphi 0, %s25
    %s19 = sphi 0, %s17
    %s20 = sphi 0, %s18
    %s21 = sphi 0, %s19
    %s22 = sphi 0, %s20
    %s34 = sphi 0, %s36
    %s37 = sphi 0, %s34
    %s38 = sphi 0, %s37
    %s54 = sphi 0, %s38
    %s60 = sphi 0, %s62
    %s63 = sphi 0, %s60
    %s64 = sphi 0, %s63
    %s80 = sphi 0, %s64
    %s84 = sphi 0, %s84
    %s86 = sphi 0, %s84
    %s87 = sphi 0, %s86
    %s101 = sphi 0, %s87
    %s105 = sphi 0, %s105
    %s107 = sphi 0, %s105
    %s108 = sphi 0, %s107
    %s122 = sphi 0, %s108
    %s130 = sphi 0, %s132
    %s133 = sphi 0, %s130
    %s134 = sphi 0, %s133
    %s150 = sphi 0, %s134
  $region4: #{mix2_se_block.3} parent=0 // loop_header_branch
    %13 = sbr.rel (%p11) target = $region8
  $region5: #{mix2_se_block.3} parent=0 // loop_body
    %s15 = ssub.s32 %s10, 1
    %s16 = ssub.s32 %s10, 2
    %s23 = sadd.s32 1, %s18
    %p24 = scmp.ge.s32.totalorder %s23, 1
    %s25 = scalar_select %p24, 0, %s23
    %s26 = sadd.s32 1, %s17
    %s27 = scalar_select %p24, %s26, %s17
    %p28 = scmp.ge.s32.totalorder %s27, 2
    %s29 = scalar_select %p28, 0, %s27
    %s30 = ssub.s32 %s17, %s29
    %s31 = ssub.s32 %s18, %s25
    %s32 = sor.u32 %s30, %s31
    %p33 = scmp.eq.s32.totalorder %s32, 0
    %s35 = sadd.s32 %s34, 1
    %s36 = scalar_select %p33, %s34, %s35
    %p39 = pneg %p33
    %p40 = scmp.eq.s32.totalorder %s10, 1
    %p41 = por %p39, %p40
    %p42 = scmp.ne.s32.totalorder %s34, %s37
    %p43 = scmp.eq.s32.totalorder %s10, 0
    %p44 = por %p42, %p43
    %p45 = scmp.ne.s32.totalorder %s34, %s37
    %p46 = scmp.eq.s32.totalorder %s15, 1
    %p47 = por %p45, %p46
    %p48 = scmp.ne.s32.totalorder %s37, %s38
    %p49 = scmp.eq.s32.totalorder %s15, 0
    %p50 = por %p48, %p49
    %p51 = scmp.ne.s32.totalorder %s37, %s38
    %p52 = scmp.eq.s32.totalorder %s16, 1
    %p53 = por %p51, %p52
    %p55 = scmp.ne.s32.totalorder %s38, %s54
    %p56 = scmp.eq.s32.totalorder %s16, 0
    %p57 = por %p55, %p56
    %s58 = ssub.s32 %s17, %s29
    %p59 = scmp.eq.s32.totalorder %s58, 0
    %s61 = sadd.s32 %s60, 1
    %s62 = scalar_select %p59, %s60, %s61
    %p65 = pneg %p59
    %p66 = scmp.eq.s32.totalorder %s10, 1
    %p67 = por %p65, %p66
    %p68 = scmp.ne.s32.totalorder %s60, %s63
    %p69 = scmp.eq.s32.totalorder %s10, 0
    %p70 = por %p68, %p69
    %p71 = scmp.ne.s32.totalorder %s60, %s63
    %p72 = scmp.eq.s32.totalorder %s15, 1
    %p73 = por %p71, %p72
    %p74 = scmp.ne.s32.totalorder %s63, %s64
    %p75 = scmp.eq.s32.totalorder %s15, 0
    %p76 = por %p74, %p75
    %p77 = scmp.ne.s32.totalorder %s63, %s64
    %p78 = scmp.eq.s32.totalorder %s16, 1
    %p79 = por %p77, %p78
    %p81 = scmp.ne.s32.totalorder %s64, %s80
    %p82 = scmp.eq.s32.totalorder %s16, 0
    %p83 = por %p81, %p82
    %s85 = sadd.s32 %s84, 1
    %p88 = scmp.eq.s32.totalorder %s10, 1
    %p89 = scmp.ne.s32.totalorder %s84, %s86
    %p90 = scmp.eq.s32.totalorder %s10, 0
    %p91 = por %p89, %p90
    %p92 = scmp.ne.s32.totalorder %s84, %s86
    %p93 = scmp.eq.s32.totalorder %s15, 1
    %p94 = por %p92, %p93
    %p95 = scmp.ne.s32.totalorder %s86, %s87
    %p96 = scmp.eq.s32.totalorder %s15, 0
    %p97 = por %p95, %p96
    %p98 = scmp.ne.s32.totalorder %s86, %s87
    %p99 = scmp.eq.s32.totalorder %s16, 1
    %p100 = por %p98, %p99
    %p102 = scmp.ne.s32.totalorder %s87, %s101
    %p103 = scmp.eq.s32.totalorder %s16, 0
    %p104 = por %p102, %p103
    %s106 = sadd.s32 %s105, 1
    %p109 = scmp.eq.s32.totalorder %s10, 1
    %p110 = scmp.ne.s32.totalorder %s105, %s107
    %p111 = scmp.eq.s32.totalorder %s10, 0
    %p112 = por %p110, %p111
    %p113 = scmp.ne.s32.totalorder %s105, %s107
    %p114 = scmp.eq.s32.totalorder %s15, 1
    %p115 = por %p113, %p114
    %p116 = scmp.ne.s32.totalorder %s107, %s108
    %p117 = scmp.eq.s32.totalorder %s15, 0
    %p118 = por %p116, %p117
    %p119 = scmp.ne.s32.totalorder %s107, %s108
    %p120 = scmp.eq.s32.totalorder %s16, 1
    %p121 = por %p119, %p120
    %p123 = scmp.ne.s32.totalorder %s108, %s122
    %p124 = scmp.eq.s32.totalorder %s16, 0
    %p125 = por %p123, %p124
    %s126 = ssub.s32 %s17, %s29
    %s127 = ssub.s32 %s18, %s25
    %s128 = sor.u32 %s126, %s127
    %p129 = scmp.eq.s32.totalorder %s128, 0
    %s131 = sadd.s32 %s130, 1
    %s132 = scalar_select %p129, %s130, %s131
    %p135 = pneg %p129
    %p136 = scmp.eq.s32.totalorder %s10, 1
    %p137 = por %p135, %p136
    %p138 = scmp.ne.s32.totalorder %s130, %s133
    %p139 = scmp.eq.s32.totalorder %s10, 0
    %p140 = por %p138, %p139
    %p141 = scmp.ne.s32.totalorder %s130, %s133
    %p142 = scmp.eq.s32.totalorder %s15, 1
    %p143 = por %p141, %p142
    %p144 = scmp.ne.s32.totalorder %s133, %s134
    %p145 = scmp.eq.s32.totalorder %s15, 0
    %p146 = por %p144, %p145
    %p147 = scmp.ne.s32.totalorder %s133, %s134
    %p148 = scmp.eq.s32.totalorder %s16, 1
    %p149 = por %p147, %p148
    %p151 = scmp.ne.s32.totalorder %s134, %s150
    %p152 = scmp.eq.s32.totalorder %s16, 0
    %p153 = por %p151, %p152
    %p154 = scmp.le.s32.totalorder 1, %s10
    %p155 = scmp.lt.s32.totalorder %s10, 3
    %p156 = pnand %p154, %p155
    %p157 = pneg %p156
    // Predicated region
    $region9: #{mix2_se_block.3} parent=5 // pred_check
      _
    $region10: #{mix2_se_block.3} parent=5 // pred_check_branch
      %159 = sbr.rel (%p156) target = $region12
    $region11: #{mix2_se_block.3} parent=5 // pred_region
      %s160 = ssub.s32 %s10, 1
      // Predicated region
      $region13: #{mix2_se_block.3} parent=11 // pred_check
        %p161 = pneg %p97
      $region14: #{mix2_se_block.3} parent=11 // pred_check_branch
        %163 = sbr.rel (%p161) target = $region16
      $region15: #{mix2_se_block.3} parent=11 // pred_region
        _
      $region16: #{mix2_se_block.3} parent=11 // pred_fallthru
        _
      // Predicated region
      $region17: #{mix2_se_block.3} parent=11 // pred_check
        %p164 = pneg %p118
      $region18: #{mix2_se_block.3} parent=11 // pred_check_branch
        %166 = sbr.rel (%p164) target = $region20
      $region19: #{mix2_se_block.3} parent=11 // pred_region
        _
      $region20: #{mix2_se_block.3} parent=11 // pred_fallthru
        _
    $region12: #{mix2_se_block.3} parent=5 // pred_fallthru
      _
    %p167 = scmp.lt.s32.totalorder %s10, 2
    // Predicated region
    $region21: #{mix2_se_block.3} parent=5 // pred_check
      %p168 = pneg %p167
    $region22: #{mix2_se_block.3} parent=5 // pred_check_branch
      %170 = sbr.rel (%p168) target = $region24
    $region23: #{mix2_se_block.3} parent=5 // pred_region
      // Predicated region
      $region25: #{mix2_se_block.3} parent=23 // pred_check
        %p171 = pneg %p44
      $region26: #{mix2_se_block.3} parent=23 // pred_check_branch
        %173 = sbr.rel (%p171) target = $region28
      $region27: #{mix2_se_block.3} parent=23 // pred_region
        %s174 = smul.u32 2, %s18
        %p175 = scmp.lt.s32.totalorder %s17, 1
        %s176 = scalar_select %p175, %s17, 1
        %p177 = scmp.lt.s32.totalorder %s174, 1
        %s178 = scalar_select %p177, %s174, 1
        %s179 = smul.addr %s176, 2
        %s180 = sadd.s32 %s178, %s179
        %s181 = smul.addr %s180, 4
        %s182 = scalar_lea.vmem %s0, %s181
        %s183 = smul.u32 2, %s18
      $region28: #{mix2_se_block.3} parent=23 // pred_fallthru
        _
      // Predicated region
      $region29: #{mix2_se_block.3} parent=23 // pred_check
        %p184 = pneg %p70
      $region30: #{mix2_se_block.3} parent=23 // pred_check_branch
        %186 = sbr.rel (%p184) target = $region32
      $region31: #{mix2_se_block.3} parent=23 // pred_region
        %p187 = scmp.lt.s32.totalorder %s17, 1
        %s188 = scalar_select %p187, %s17, 1
        %s189 = smul.addr %s188, 4
        %s190 = scalar_lea.vmem %s1, %s189
      $region32: #{mix2_se_block.3} parent=23 // pred_fallthru
        _
    $region24: #{mix2_se_block.3} parent=5 // pred_fallthru
      _
    %p191 = scmp.le.s32.totalorder 1, %s10
    %p192 = scmp.lt.s32.totalorder %s10, 3
    %p193 = pnand %p191, %p192
    %p194 = pneg %p193
    // Predicated region
    $region33: #{mix2_se_block.3} parent=5 // pred_check
      _
    $region34: #{mix2_se_block.3} parent=5 // pred_check_branch
      %196 = sbr.rel (%p193) target = $region36
    $region35: #{mix2_se_block.3} parent=5 // pred_region
      %s197 = ssub.s32 %s10, 1
      %s198 = smul.u32 2, %s20
      %p199 = scmp.lt.s32.totalorder %s19, 1
      %s200 = scalar_select %p199, %s19, 1
      %p201 = scmp.lt.s32.totalorder %s198, 1
      %s202 = scalar_select %p201, %s198, 1
      %s203 = smul.addr %s200, 2
      %s204 = sadd.s32 %s202, %s203
      %s205 = smul.addr %s204, 4
      %s206 = scalar_lea.vmem %s0, %s205
      %p207 = pneg %p50
      %p208 = pneg %p47
      %p209 = scmp.lt.s32.totalorder %s19, 1
      %s210 = scalar_select %p209, %s19, 1
      %s211 = smul.addr %s210, 4
      %s212 = scalar_lea.vmem %s1, %s211
      %p213 = pneg %p76
      %p214 = pneg %p73
      %p215 = pneg %p97
      %p216 = pneg %p94
      %p217 = pneg %p118
      %p218 = pneg %p115
      %p219 = pneg %p146
      %p220 = pneg %p143
      %s221 = smul.u32 2, %s20
      %p222 = scmp.lt.s32.totalorder %s19, 1
      %s223 = scalar_select %p222, %s19, 1
      %p224 = scmp.lt.s32.totalorder %s221, 1
      %s225 = scalar_select %p224, %s221, 1
      %s226 = smul.addr %s223, 2
      %s227 = sadd.s32 %s225, %s226
      %s228 = smul.addr %s227, 4
      %s229 = scalar_lea.vmem %s4, %s228
      %s230 = smul.u32 2, %s20
      %p231 = scmp.lt.s32.totalorder %s19, 1
      %s232 = scalar_select %p231, %s19, 1
      %p233 = scmp.lt.s32.totalorder %s230, 1
      %s234 = scalar_select %p233, %s230, 1
      %s235 = smul.addr %s232, 2
      %s236 = sadd.s32 %s234, %s235
      %s237 = smul.addr %s236, 4
      %s238 = scalar_lea.vmem %s0, %s237
      %s239 = smul.u32 2, %s20
      %p240 = scmp.lt.s32.totalorder %s19, 1
      %s241 = scalar_select %p240, %s19, 1
      %s242 = smul.addr %s241, 4
      %s243 = scalar_lea.vmem %s1, %s242
      %s244 = smul.u32 2, %s20
      %p245 = scmp.lt.s32.totalorder %s19, 1
      %s246 = scalar_select %p245, %s19, 1
      %p247 = scmp.lt.s32.totalorder %s244, 1
      %s248 = scalar_select %p247, %s244, 1
      %s249 = smul.addr %s246, 2
      %s250 = sadd.s32 %s248, %s249
      %s251 = smul.addr %s250, 4
      %s252 = scalar_lea.vmem %s4, %s251
      %s253 = smul.u32 2, %s20
      %v254 = vld [vmem:[%s243] sm:$0xf]
      %v255 = vld [vmem:[%s2] sm:$0xff]
      %vm256 = vcmask 31744
      %v258 = vsel %vm256, %v255, 0
      %vm260 = vcmask 1043456
      %v262 = vsel %vm260, %v254, 0
      %264 = vmatprep.subr.mxu0 0.0
      %265 = vmatpush1.msra.mxu0 0.0
      %266 = vmatprep.subr.mxu0 0.0
      %267 = vmatpush1.msra.mxu0 0.0
      %268 = vmatprep.subr.mxu0 0.0
      %269 = vmatpush1.msra.mxu0 0.0
      %270 = vmatprep.subr.mxu0 0.0
      %271 = vmatpush1.msra.mxu0 0.0
      %272 = vmatprep.subr.mxu0 0.0
      %273 = vmatpush1.msra.mxu0 0.0
      %274 = vmatprep.subr.mxu0 0.0
      %275 = vmatpush1.msra.mxu0 0.0
      %276 = vmatprep.subr.mxu0 0.0
      %277 = vmatpush1.msra.mxu0 0.0
      %278 = vmatprep.subr.mxu0 0.0
      %279 = vmatpush1.msra.mxu0 0.0
      %280 = vmatprep.subr.mxu0 0.0
      %281 = vmatpush1.msra.mxu0 0.0
      %282 = vmatprep.subr.mxu0 0.0
      %283 = vmatpush1.msra.mxu0 0.0
      %284 = vmatprep.subr.mxu0 0.0
      %285 = vmatpush1.msra.mxu0 0.0
      %286 = vmatprep.subr.mxu0 0.0
      %287 = vmatpush1.msra.mxu0 0.0
      %288 = vmatprep.subr.mxu0 0.0
      %289 = vmatpush1.msra.mxu0 0.0
      %290 = vmatprep.subr.mxu0 0.0
      %291 = vmatpush1.msra.mxu0 0.0
      %292 = vmatprep.subr.mxu0 0.0
      %293 = vmatpush1.msra.mxu0 0.0
      %294 = vmatprep.subr.mxu0 0.0
      %295 = vmatpush1.msra.mxu0 %v262
      %296 = vmatprep.subr.mxu0 0.0
      %297 = vmatpush2.msra.mxu0 0.0
      %298 = vmatprep.subr.mxu0 0.0
      %299 = vmatpush2.msra.mxu0 0.0
      %300 = vmatprep.subr.mxu0 0.0
      %301 = vmatpush2.msra.mxu0 0.0
      %302 = vmatprep.subr.mxu0 0.0
      %303 = vmatpush2.msra.mxu0 0.0
      %304 = vmatprep.subr.mxu0 0.0
      %305 = vmatpush2.msra.mxu0 0.0
      %306 = vmatprep.subr.mxu0 0.0
      %307 = vmatpush2.msra.mxu0 0.0
      %308 = vmatprep.subr.mxu0 0.0
      %309 = vmatpush2.msra.mxu0 0.0
      %310 = vmatprep.subr.mxu0 0.0
      %311 = vmatpush2.msra.mxu0 0.0
      %312 = vmatprep.subr.mxu0 0.0
      %313 = vmatpush2.msra.mxu0 0.0
      %314 = vmatprep.subr.mxu0 0.0
      %315 = vmatpush2.msra.mxu0 0.0
      %316 = vmatprep.subr.mxu0 0.0
      %317 = vmatpush2.msra.mxu0 0.0
      %318 = vmatprep.subr.mxu0 0.0
      %319 = vmatpush2.msra.mxu0 0.0
      %320 = vmatprep.subr.mxu0 0.0
      %321 = vmatpush2.msra.mxu0 0.0
      %322 = vmatprep.subr.mxu0 0.0
      %323 = vmatpush2.msra.mxu0 0.0
      %324 = vmatprep.subr.mxu0 0.0
      %325 = vmatpush2.msra.mxu0 0.0
      %326 = vmatprep.subr.mxu0 0.0
      %327 = vmatpush2.msra.mxu0 0.0
      %328 = vmatprep.mubr.f32.mxu0 0.0
      %329 = vmatmul.mubr.f32.gmra.mxu0 %v258
      %v330 = vpop.f32.mrf.mxu0
      %v331 = vadd.f32 0.0, %v330
      %v332 = vpop.f32.mrf.mxu0
      %333 = vdwg.mxu0
      %v334 = vmax.f32 %v331, 0.0
      %v335 = vld [vmem:[%s3] sm:$0xf]
      %vm336 = vcmask 64512
      %v338 = vsel %vm336, %v335, 0
      %340 = vmatprep.subr.mxu0 0.0
      %341 = vmatpush1.msra.mxu0 0.0
      %342 = vmatprep.subr.mxu0 0.0
      %343 = vmatpush1.msra.mxu0 0.0
      %344 = vmatprep.subr.mxu0 0.0
      %345 = vmatpush1.msra.mxu0 0.0
      %346 = vmatprep.subr.mxu0 0.0
      %347 = vmatpush1.msra.mxu0 0.0
      %348 = vmatprep.subr.mxu0 0.0
      %349 = vmatpush1.msra.mxu0 0.0
      %350 = vmatprep.subr.mxu0 0.0
      %351 = vmatpush1.msra.mxu0 0.0
      %352 = vmatprep.subr.mxu0 0.0
      %353 = vmatpush1.msra.mxu0 0.0
      %354 = vmatprep.subr.mxu0 0.0
      %355 = vmatpush1.msra.mxu0 0.0
      %356 = vmatprep.subr.mxu0 0.0
      %357 = vmatpush1.msra.mxu0 0.0
      %358 = vmatprep.subr.mxu0 0.0
      %359 = vmatpush1.msra.mxu0 0.0
      %360 = vmatprep.subr.mxu0 0.0
      %361 = vmatpush1.msra.mxu0 0.0
      %362 = vmatprep.subr.mxu0 0.0
      %363 = vmatpush1.msra.mxu0 0.0
      %364 = vmatprep.subr.mxu0 0.0
      %365 = vmatpush1.msra.mxu0 0.0
      %366 = vmatprep.subr.mxu0 0.0
      %367 = vmatpush1.msra.mxu0 0.0
      %368 = vmatprep.subr.mxu0 0.0
      %369 = vmatpush1.msra.mxu0 0.0
      %370 = vmatprep.subr.mxu0 0.0
      %371 = vmatpush1.msra.mxu0 %v334
      %372 = vmatprep.subr.mxu0 0.0
      %373 = vmatpush2.msra.mxu0 0.0
      %374 = vmatprep.subr.mxu0 0.0
      %375 = vmatpush2.msra.mxu0 0.0
      %376 = vmatprep.subr.mxu0 0.0
      %377 = vmatpush2.msra.mxu0 0.0
      %378 = vmatprep.subr.mxu0 0.0
      %379 = vmatpush2.msra.mxu0 0.0
      %380 = vmatprep.subr.mxu0 0.0
      %381 = vmatpush2.msra.mxu0 0.0
      %382 = vmatprep.subr.mxu0 0.0
      %383 = vmatpush2.msra.mxu0 0.0
      %384 = vmatprep.subr.mxu0 0.0
      %385 = vmatpush2.msra.mxu0 0.0
      %386 = vmatprep.subr.mxu0 0.0
      %387 = vmatpush2.msra.mxu0 0.0
      %388 = vmatprep.subr.mxu0 0.0
      %389 = vmatpush2.msra.mxu0 0.0
      %390 = vmatprep.subr.mxu0 0.0
      %391 = vmatpush2.msra.mxu0 0.0
      %392 = vmatprep.subr.mxu0 0.0
      %393 = vmatpush2.msra.mxu0 0.0
      %394 = vmatprep.subr.mxu0 0.0
      %395 = vmatpush2.msra.mxu0 0.0
      %396 = vmatprep.subr.mxu0 0.0
      %397 = vmatpush2.msra.mxu0 0.0
      %398 = vmatprep.subr.mxu0 0.0
      %399 = vmatpush2.msra.mxu0 0.0
      %400 = vmatprep.subr.mxu0 0.0
      %401 = vmatpush2.msra.mxu0 0.0
      %402 = vmatprep.subr.mxu0 0.0
      %403 = vmatpush2.msra.mxu0 0.0
      %404 = vmatprep.mubr.f32.mxu0 0.0
      %405 = vmatmul.mubr.f32.gmra.mxu0 %v338
      %v406 = vpop.f32.mrf.mxu0
      %v407 = vadd.f32 0.0, %v406
      %v408 = vpop.f32.mrf.mxu0
      %409 = vdwg.mxu0
      %v410 = vxor.u32 %v407, 2147483648
      %v411 = vmul.f32 %v410, 1.442695
      %v412 = vpow.pop %v411
      %v413 = vadd.f32 %v412, 1.0
      %v414 = vrcp.pop %v413
      %v415 = vmul.f32 1.0, %v414
      %v416 = vld [vmem:[%s238] sm:$0xff]
      %418 = vset.pattern.permute.xlu0 0
      %419 = vperm.xlu0 %418, %v415
      %v420 = vpop.permute.xlu0 %419
      %v422 = vunpack.c.l.s4 839922192
      %v423 = vunpack.c.0.s8 %v422
      %v424 = vlaneseq
      %v425 = vshrl.u32 %v424, 7
      %v426 = vsub.s32 %v423, %v425
      %v427 = vrot.slane %v420, %v426
      %v429 = vmul.f32 %v416, %v427
      %430 = vst [vmem:[%s252] sm:$0xff] %v429
      %s431 = smul.u32 2, %s20
      %p432 = scmp.lt.s32.totalorder %s19, 1
      %s433 = scalar_select %p432, %s19, 1
      %p434 = scmp.lt.s32.totalorder %s431, 1
      %s435 = scalar_select %p434, %s431, 1
      %s436 = smul.addr %s433, 2
      %s437 = sadd.s32 %s435, %s436
      %s438 = smul.addr %s437, 4
      %s439 = scalar_lea.vmem %s4, %s438
      // Predicated region
      $region37: #{mix2_se_block.3} parent=35 // pred_check
        %p440 = pneg %p143
      $region38: #{mix2_se_block.3} parent=35 // pred_check_branch
        %442 = sbr.rel (%p440) target = $region40
      $region39: #{mix2_se_block.3} parent=35 // pred_region
        %s443 = smul.u32 2, %s20
      $region40: #{mix2_se_block.3} parent=35 // pred_fallthru
        _
    $region36: #{mix2_se_block.3} parent=5 // pred_fallthru
      _
    %p444 = scmp.le.s32.totalorder 2, %s10
    // Predicated region
    $region41: #{mix2_se_block.3} parent=5 // pred_check
      %p445 = pneg %p444
    $region42: #{mix2_se_block.3} parent=5 // pred_check_branch
      %447 = sbr.rel (%p445) target = $region44
    $region43: #{mix2_se_block.3} parent=5 // pred_region
      %s448 = ssub.s32 %s10, 2
      // Predicated region
      $region45: #{mix2_se_block.3} parent=43 // pred_check
        %p449 = pneg %p149
      $region46: #{mix2_se_block.3} parent=43 // pred_check_branch
        %451 = sbr.rel (%p449) target = $region48
      $region47: #{mix2_se_block.3} parent=43 // pred_region
        %s452 = smul.u32 2, %s22
        %p453 = scmp.lt.s32.totalorder %s21, 1
        %s454 = scalar_select %p453, %s21, 1
        %p455 = scmp.lt.s32.totalorder %s452, 1
        %s456 = scalar_select %p455, %s452, 1
        %s457 = smul.addr %s454, 2
        %s458 = sadd.s32 %s456, %s457
        %s459 = smul.addr %s458, 4
        %s460 = scalar_lea.vmem %s4, %s459
      $region48: #{mix2_se_block.3} parent=43 // pred_fallthru
        _
    $region44: #{mix2_se_block.3} parent=5 // pred_fallthru
      _
  $region6: #{mix2_se_block.3} parent=0 // loop_footer
    %s14 = sadd.s32 1, %s10
  $region7: #{mix2_se_block.3} parent=0 // loop_footer_branch
    %9 = sbr.rel target = $region3
  $region8: #{mix2_se_block.3} parent=0 // loop_exit
    _

</llo_original>
